<compile_context>
chip_gen: v7x
topology: tpu7x:2x2x1
jax: 0.10.0
libtpu: 0.0.40
codegen_flags: <defaults>
</compile_context>

<pallas_src>
import jax
import jax.numpy as jnp
from jax.experimental import pallas as pl
from jax.experimental.pallas import tpu as pltpu


def _relu_kernel(x_ref, o_ref):
    """Elementwise ReLU on one lane-dense VMEM block."""
    o_ref[...] = jnp.maximum(x_ref[...], jnp.zeros((), x_ref.dtype))


def _pick_lane_width(total_elems, h, w):
    """Largest 128-multiple lane width (4096..128) dividing the element count."""
    for lane in (4096, 2048, 1024, 512, 256, 128):
        if total_elems % lane == 0:
            return lane
    return None  # fall back to (rows, h*w) layout


def relu_sets_forward(x, donate_input=False):
    """x: (b, n, c, h, w) -> ReLU(x), same shape/dtype.

    Mirrors ReluSets.forward: view to (b*n, c, h, w), relu, view back —
    the views are pure metadata, so only the ReLU is a kernel.
    """
    b, n, c, h, w = x.shape
    orig_shape = x.shape
    total = b * n * c * h * w
    elem_bytes = jnp.dtype(x.dtype).itemsize

    # --- Lane-dense 2-D slab (layout plumbing only; ReLU is shape-agnostic) ---
    lane = _pick_lane_width(total, h, w)
    if lane is not None:
        x2 = x.reshape(total // lane, lane)
    else:
        # h*w may not be a 128-multiple here; block covers the full last dim,
        # so it is still legal (just potentially masked stores).
        x2 = x.reshape(b * n * c, h * w)
    M, N = x2.shape
    total_bytes = M * N * elem_bytes

    # --- Tile-size derivation ---
    # Sublane packing: 8 rows for f32, 16 for bf16, 32 for int8/fp8.
    sublane = max(8, 32 // elem_bytes)

    # Per-buffer budget: 8 MiB.  With 2 inputs-outputs x 2-deep pipelining that
    # is ~32 MiB of VMEM, under the explicit 48 MiB limit below (v7x physical
    # VMEM is 64 MiB; v5e/v6e have 128 MiB).
    per_buffer_budget = 8 * 1024 * 1024
    small_threshold = 2 * 1024 * 1024  # below this, one block / one grid step

    if total_bytes <= small_threshold:
        tile_m = M
    else:
        rows_budget = (per_buffer_budget // (N * elem_bytes)) // sublane * sublane
        rows_budget = max(sublane, rows_budget)
        # Force >= 2 grid steps so dimension_semantics=("parallel",) can shard
        # the row axis across v7x's two TensorCores.
        half_rows = -(-M // 2)                       # ceil(M / 2)
        half_rows = -(-half_rows // sublane) * sublane  # round up to sublane
        tile_m = min(rows_budget, half_rows, M)
    tile_m = max(1, tile_m)

    grid_m = pl.cdiv(M, tile_m)

    cost = pl.CostEstimate(
        flops=M * N,                       # one max per element
        transcendentals=0,
        bytes_accessed=2 * M * N * elem_bytes,
    )

    out2 = pl.pallas_call(
        _relu_kernel,
        out_shape=jax.ShapeDtypeStruct((M, N), x2.dtype),
        grid=(grid_m,),
        in_specs=[pl.BlockSpec((tile_m, N), lambda i: (i, 0))],
        out_specs=pl.BlockSpec((tile_m, N), lambda i: (i, 0)),
        compiler_params=pltpu.CompilerParams(
            dimension_semantics=("parallel",),
            vmem_limit_bytes=48 << 20,
        ),
        cost_estimate=cost,
        input_output_aliases=({0: 0} if donate_input else {}),
    )(x2)

    return out2.reshape(orig_shape)


def _reference_forward(x):
    """Pure-JAX reference of ReluSets.forward."""
    b, n, c, h, w = x.shape
    xf = x.reshape(b * n, c, h, w)
    xf = jnp.maximum(xf, 0.0)
    return xf.reshape(b, n, c, h, w)


if __name__ == "__main__":
    key = jax.random.PRNGKey(0)

    # Small shapes consistent with the module: x is (b, n, c, h, w).
    b, n, c, h, w = 2, 3, 4, 16, 16
    x = jax.random.normal(key, (b, n, c, h, w), dtype=jnp.float32)

    out = relu_sets_forward(x)
    out = jax.block_until_ready(out)

    ref = _reference_forward(x)
    assert out.shape == (b, n, c, h, w), out.shape
    assert out.dtype == x.dtype, out.dtype
    assert jnp.allclose(out, ref), float(jnp.max(jnp.abs(out - ref)))

    print("KERNEL_OK")
</pallas_src>

<mosaic_0001>
module attributes {stable_mosaic.version = 11 : i64} {
  func.func @_relu_kernel(%arg0: i32, %arg1: memref<3x2048xf32, #tpu.memory_space<vmem>>, %arg2: memref<3x2048xf32, #tpu.memory_space<vmem>>) attributes {dimension_semantics = [#tpu.dimension_semantics<parallel>], iteration_bounds = array<i64: 1>, scalar_prefetch = 0 : i64, scratch_operands = 0 : i64, tpu.core_type = #tpu.core_type<tc>, window_params = [{transform_indices = @transform_0, window_bounds = array<i64: 3, 2048>}, {transform_indices = @transform_1, window_bounds = array<i64: 3, 2048>}]} {
    %c0 = arith.constant 0 : index
    %c0_0 = arith.constant 0 : index
    %0 = vector.load %arg1[%c0, %c0_0] : memref<3x2048xf32, #tpu.memory_space<vmem>>, vector<3x2048xf32>
    %cst = arith.constant 0.000000e+00 : f32
    %1 = vector.broadcast %cst : f32 to vector<3x2048xf32>
    %2 = arith.maximumf %0, %1 : vector<3x2048xf32>
    %c0_1 = arith.constant 0 : index
    %c0_2 = arith.constant 0 : index
    %3 = vector.load %arg2[%c0_1, %c0_2] : memref<3x2048xf32, #tpu.memory_space<vmem>>, vector<3x2048xf32>
    tpu.vector_store %arg2[%c0_1, %c0_2], %2 {strides = array<i32>} : memref<3x2048xf32, #tpu.memory_space<vmem>>, vector<3x2048xf32>,
    return
  }
  func.func @transform_0(%arg0: i32) -> (i32, i32) {
    %c0_i32 = arith.constant 0 : i32
    %c0_i32_0 = arith.constant 0 : i32
    return %arg0, %c0_i32 : i32, i32
  }
  func.func @transform_1(%arg0: i32) -> (i32, i32) {
    %c0_i32 = arith.constant 0 : i32
    %c0_i32_0 = arith.constant 0 : i32
    return %arg0, %c0_i32 : i32, i32
  }
}

</mosaic_0001>

<llo_original>
// kernel: tpu_custom_call.1
$region0: #{tpu_custom_call.1}
  #allocation0 [shape = 'u32[]', space=smem, size = 0x4, offset = 0x4, fixed_abs, tag = 'smem constant byte address 0x4 - core index']
  #allocation1 [shape = 'u32[144,128]{1,0:T(1,128)}', space=vmem, size = 0x12000, scoped, tag = 'internal scratch']
  %s0 = inlined_call_operand.hbm [shape: f32[3,2048], index: 0, kind: input, shape index: {}]
  %s1 = inlined_call_operand.hbm [shape: f32[3,2048], index: 1, kind: output, shape index: {}]
  %s2 = sld [smem:[#allocation0]]
  $region18: #{tpu_custom_call.1} parent=0
    _
  %s4 = ssub.s32 1, %s2
  %s5 = scalar_select 0, %s4, %s2
  $region1: #{tpu_custom_call.1} parent=0
    #allocation2 [shape = 'u8[32768]{0}', space=vmem, size = 0x8000, scoped, tag = 'input window, operand 0, single buffered']
    #allocation3 [shape = 's32[1]{0}', space=sflag, size = 0x4, scoped, tag = 'scoped memory for tpu_custom_call.1']
    #allocation4 [shape = 's32[1]{0}', space=sflag, size = 0x4, scoped, tag = 'scoped memory for tpu_custom_call.1']
    #allocation5 [shape = 'u8[32768]{0}', space=vmem, size = 0x8000, scoped, tag = 'output window, operand 0, single buffered']
    %6 = vsyncpa [#allocation3], 0
    %7 = vsyncpa [#allocation4], 0
    // Predicated region
    $region2: #{tpu_custom_call.1} parent=1 // pred_check
      _
    $region3: #{tpu_custom_call.1} parent=1 // pred_check_branch
      %9 = sbr.rel (0) target = $region5
    $region4: #{tpu_custom_call.1} parent=1 // pred_region
      %s11 = ssub.s32 1024, 1024
      %12 = vsyncadd [#allocation3], %s11
      %s14 = sshll.u32 [#allocation2], 4
      %s15 = int_to_ptr.vmem [resolvable:$true] %s14
      %17 = dma.hbm_to_vmem [thread:$0]  %s0, 1024, %s15, [#allocation3]
    $region5: #{tpu_custom_call.1} parent=1 // pred_fallthru
      _
    // Predicated region
    $region6: #{tpu_custom_call.1} parent=1 // pred_check
      _
    $region7: #{tpu_custom_call.1} parent=1 // pred_check_branch
      %19 = sbr.rel (0) target = $region9
    $region8: #{tpu_custom_call.1} parent=1 // pred_region
      %20 = dma.done [#allocation3], 1024
    $region9: #{tpu_custom_call.1} parent=1 // pred_fallthru
      _
    %v21 = vld [vmem:[#allocation2] sm:$0x77]
    %v22 = vld [vmem:[#allocation2 + $0x8] sm:$0x77]
    %v23 = vld [vmem:[#allocation2 + $0x10] sm:$0x77]
    %v24 = vld [vmem:[#allocation2 + $0x18] sm:$0x77]
    %v25 = vld [vmem:[#allocation2 + $0x20] sm:$0x77]
    %v26 = vld [vmem:[#allocation2 + $0x28] sm:$0x77]
    %v27 = vld [vmem:[#allocation2 + $0x30] sm:$0x77]
    %v28 = vld [vmem:[#allocation2 + $0x38] sm:$0x77]
    %v29 = vmax.f32 %v21, 0.0
    %v30 = vmax.f32 %v22, 0.0
    %v31 = vmax.f32 %v23, 0.0
    %v32 = vmax.f32 %v24, 0.0
    %v33 = vmax.f32 %v25, 0.0
    %v34 = vmax.f32 %v26, 0.0
    %v35 = vmax.f32 %v27, 0.0
    %v36 = vmax.f32 %v28, 0.0
    %37 = vst [vmem:[#allocation5] sm:$0x77] %v29
    %38 = vst [vmem:[#allocation5 + $0x8] sm:$0x77] %v30
    %39 = vst [vmem:[#allocation5 + $0x10] sm:$0x77] %v31
    %40 = vst [vmem:[#allocation5 + $0x18] sm:$0x77] %v32
    %41 = vst [vmem:[#allocation5 + $0x20] sm:$0x77] %v33
    %42 = vst [vmem:[#allocation5 + $0x28] sm:$0x77] %v34
    %43 = vst [vmem:[#allocation5 + $0x30] sm:$0x77] %v35
    %44 = vst [vmem:[#allocation5 + $0x38] sm:$0x77] %v36
    // Predicated region
    $region10: #{tpu_custom_call.1} parent=1 // pred_check
      _
    $region11: #{tpu_custom_call.1} parent=1 // pred_check_branch
      %46 = sbr.rel (0) target = $region13
    $region12: #{tpu_custom_call.1} parent=1 // pred_region
      %s48 = ssub.s32 1024, 1024
      %49 = vsyncadd [#allocation4], %s48
      %s51 = sshll.u32 [#allocation5], 4
      %s52 = int_to_ptr.vmem [resolvable:$true] %s51
      %54 = dma.vmem_to_hbm [thread:$0]  %s52, 1024, %s1, [#allocation4]
    $region13: #{tpu_custom_call.1} parent=1 // pred_fallthru
      _
    // Predicated region
    $region14: #{tpu_custom_call.1} parent=1 // pred_check
      _
    $region15: #{tpu_custom_call.1} parent=1 // pred_check_branch
      %56 = sbr.rel (0) target = $region17
    $region16: #{tpu_custom_call.1} parent=1 // pred_region
      %57 = dma.done [#allocation4], 1024
    $region17: #{tpu_custom_call.1} parent=1 // pred_fallthru
      _
    %58 = vsyncpa [#allocation3], 1
    %59 = vsyncpa [#allocation4], 1

</llo_original>
